<compile_context>
chip_gen: v7x
topology: tpu7x:2x2x1
jax: 0.10.0
libtpu: 0.0.40
codegen_flags: <defaults>
</compile_context>

<pallas_src>
import numpy as np
import jax
import jax.numpy as jnp
from jax import lax
from jax.experimental import pallas as pl
from jax.experimental.pallas import tpu as pltpu

EMB_DIM = 32  # opt.embedding_size (opt.n_layers = 1)


def _round_up(x, m):
    return ((x + m - 1) // m) * m


# ----------------------------------------------------------------------------
# Fused kernel: LightGCN propagation (row-tiled) + BPR scoring (last step).
#   refs: idx (8, B_pad) i32 | A_hat row tile (tm, N_pad) | E0 (N_pad, D)
#   outs: pred_i (1, B_pad), pred_j (1, B_pad)      scratch: E_final (N_pad, D)
# ----------------------------------------------------------------------------
def _fused_lightgcn_bpr_kernel(idx_ref, a_ref, e0_ref, pi_ref, pj_ref, e_scr):
    m = pl.program_id(0)
    n_tiles = pl.num_programs(0)
    tm = a_ref.shape[0]

    # ---- propagation for this row tile:
    #      E_final[rows] = 0.5 * (E0[rows] + A_hat[rows, :] @ E0)
    row0 = pl.multiple_of(m * tm, tm)
    e1_rows = jnp.dot(a_ref[...], e0_ref[...],
                      preferred_element_type=jnp.float32)          # (tm, D) MXU
    e_scr[pl.ds(row0, tm), :] = 0.5 * (e0_ref[pl.ds(row0, tm), :] + e1_rows)

    # ---- BPR scoring once the full E_final table is resident in VMEM.
    @pl.when(m == n_tiles - 1)
    def _():
        n_pad = e_scr.shape[0]
        b_pad = pi_ref.shape[-1]
        table = e_scr[...]                                         # (N_pad, D)
        idx = idx_ref[...]                                         # (8, B_pad) i32

        # One-hot gather matrices, (N_pad, B_pad): row n, lane b is 1 iff n==idx.
        node = lax.broadcasted_iota(jnp.int32, (n_pad, b_pad), 0)
        oh_u = jnp.where(node == idx[0:1, :], 1.0, 0.0)
        oh_i = jnp.where(node == idx[1:2, :], 1.0, 0.0)
        oh_j = jnp.where(node == idx[2:3, :], 1.0, 0.0)

        # Gather-transposed embeddings via MXU: (D, B_pad) = table^T @ onehot.
        dn = (((0,), (0,)), ((), ()))
        eu_t = lax.dot_general(table, oh_u, dn,
                               preferred_element_type=jnp.float32)
        ei_t = lax.dot_general(table, oh_i, dn,
                               preferred_element_type=jnp.float32)
        ej_t = lax.dot_general(table, oh_j, dn,
                               preferred_element_type=jnp.float32)

        # Sublane reduction over D -> lane-dense (1, B_pad) score rows.
        pi_ref[...] = jnp.sum(eu_t * ei_t, axis=0, keepdims=True)
        pj_ref[...] = jnp.sum(eu_t * ej_t, axis=0, keepdims=True)


def fused_lightgcn_bpr(a_hat, e0, user_rows, item_i_rows, item_j_rows):
    n, d = e0.shape
    b = user_rows.shape[0]

    # Row tile of A_hat: 128-aligned at scale (MXU friendly on all gens),
    # 8 (sublane) at toy size so the multi-step resident-scratch path runs.
    tm = 128 if n >= 128 else 8
    n_pad = _round_up(n, tm)
    b_pad = _round_up(b, 128)

    if n_pad != n:
        a_hat = jnp.pad(a_hat, ((0, n_pad - n), (0, n_pad - n)))
        e0 = jnp.pad(e0, ((0, n_pad - n), (0, 0)))

    # Batch indices packed into one small lane-dense int32 slab (rows: u, i, j).
    idx = jnp.zeros((8, b_pad), jnp.int32)
    idx = idx.at[0, :b].set(user_rows)
    idx = idx.at[1, :b].set(item_i_rows)
    idx = idx.at[2, :b].set(item_j_rows)

    n_tiles = n_pad // tm

    # TODO(synk): at realistic LightGCN sizes A_hat should be sparse (and/or
    # bf16 with f32 accumulation); the dense N x N form here mirrors the toy
    # reference math.
    vmem_bytes = 4 * (2 * tm * n_pad      # A_hat row tiles (double buffered)
                      + 2 * n_pad * d     # E0 (resident)
                      + n_pad * d         # E_final scratch
                      + 2 * 8 * b_pad     # index slab
                      + 4 * b_pad)        # two (1, B_pad) outputs
    vmem_limit = int(min(max(vmem_bytes + (1 << 20), 16 * 2**20), 64 * 2**20))

    pi_pad, pj_pad = pl.pallas_call(
        _fused_lightgcn_bpr_kernel,
        grid=(n_tiles,),
        in_specs=[
            pl.BlockSpec((8, b_pad), lambda m: (0, 0)),       # indices (resident)
            pl.BlockSpec((tm, n_pad), lambda m: (m, 0)),      # A_hat row tile
            pl.BlockSpec((n_pad, d), lambda m: (0, 0)),       # E0 (resident)
        ],
        out_specs=[
            pl.BlockSpec((1, b_pad), lambda m: (0, 0)),
            pl.BlockSpec((1, b_pad), lambda m: (0, 0)),
        ],
        out_shape=(jax.ShapeDtypeStruct((1, b_pad), jnp.float32),
                   jax.ShapeDtypeStruct((1, b_pad), jnp.float32)),
        scratch_shapes=[pltpu.VMEM((n_pad, d), jnp.float32)],
        compiler_params=pltpu.CompilerParams(
            # "arbitrary": the last step's scoring reads every previous step's
            # scratch write, so the row axis must stay sequential on one core.
            dimension_semantics=("arbitrary",),
            vmem_limit_bytes=vmem_limit,
        ),
        cost_estimate=pl.CostEstimate(
            flops=2 * n_pad * n_pad * d + 3 * 2 * n_pad * d * b_pad,
            transcendentals=0,
            bytes_accessed=4 * (n_pad * n_pad + n_pad * d + 8 * b_pad
                                + 2 * b_pad),
        ),
    )(idx, a_hat, e0)

    return pi_pad.reshape(b_pad)[:b], pj_pad.reshape(b_pad)[:b]


# ----------------------------------------------------------------------------
# Module wrapper (parameter setup / glue in plain JAX).
# ----------------------------------------------------------------------------
def make_normalized_adjacency(num_users, num_items):
    """Deterministic synthetic bipartite interaction graph, symmetrically
    normalized: A_hat = D^{-1/2} A D^{-1/2}."""
    r = np.zeros((num_users, num_items), dtype=np.float32)
    for u in range(num_users):
        for k in range(4):
            r[u, (u + 5 * k) % num_items] = 1.0
    n = num_users + num_items
    a = np.zeros((n, n), dtype=np.float32)
    a[:num_users, num_users:] = r
    a[num_users:, :num_users] = r.T
    deg = np.maximum(a.sum(axis=1), 1.0)
    d_inv_sqrt = 1.0 / np.sqrt(deg)
    a_hat = a * d_inv_sqrt[:, None] * d_inv_sqrt[None, :]
    return jnp.asarray(a_hat)


def fusion_recommender_forward(params, user, item_i, item_j, num_users):
    """Reproduces FusionRecommender.forward == SecondRecommender(LightGCN)
    BPR forward: returns (prediction_i, prediction_j), each f32[B]."""
    e0 = jnp.concatenate([params["user_emb"], params["item_emb"]], axis=0)
    user_rows = user.astype(jnp.int32)
    item_i_rows = (item_i + num_users).astype(jnp.int32)
    item_j_rows = (item_j + num_users).astype(jnp.int32)
    return fused_lightgcn_bpr(params["a_hat"], e0,
                              user_rows, item_i_rows, item_j_rows)


if __name__ == "__main__":
    num_users, num_items, batch = 16, 24, 8

    key = jax.random.PRNGKey(0)
    k_u, k_i, k_user, k_pos, k_neg = jax.random.split(key, 5)

    # Deterministic parameter init (LightGCN-style normal(std=0.01)).
    params = {
        "user_emb": 0.01 * jax.random.normal(k_u, (num_users, EMB_DIM),
                                             dtype=jnp.float32),
        "item_emb": 0.01 * jax.random.normal(k_i, (num_items, EMB_DIM),
                                             dtype=jnp.float32),
        "a_hat": make_normalized_adjacency(num_users, num_items),
    }

    user = jax.random.randint(k_user, (batch,), 0, num_users, dtype=jnp.int32)
    item_i = jax.random.randint(k_pos, (batch,), 0, num_items, dtype=jnp.int32)
    item_j = jax.random.randint(k_neg, (batch,), 0, num_items, dtype=jnp.int32)

    pred_i, pred_j = fusion_recommender_forward(params, user, item_i, item_j,
                                                num_users)
    jax.block_until_ready((pred_i, pred_j))

    # float64 host reference of the same math.  Tolerance leaves headroom for
    # the MXU's default f32 matmul precision (bf16 passes, f32 accumulation).
    e0_np = np.concatenate([np.asarray(params["user_emb"], np.float64),
                            np.asarray(params["item_emb"], np.float64)], axis=0)
    a_np = np.asarray(params["a_hat"], np.float64)
    e_ref = 0.5 * (e0_np + a_np @ e0_np)
    u_np = np.asarray(user)
    i_np = np.asarray(item_i) + num_users
    j_np = np.asarray(item_j) + num_users
    ref_i = np.sum(e_ref[u_np] * e_ref[i_np], axis=-1)
    ref_j = np.sum(e_ref[u_np] * e_ref[j_np], axis=-1)
    np.testing.assert_allclose(np.asarray(pred_i), ref_i, rtol=1e-3, atol=1e-5)
    np.testing.assert_allclose(np.asarray(pred_j), ref_j, rtol=1e-3, atol=1e-5)

    # TODO(synk): fuse_pred_list / recommend_users / ouput_topN_recommender are
    # pandas-based top-K list merging with data-dependent control flow; not a
    # tensor op, left out.
    print("KERNEL_OK")
</pallas_src>

<mosaic_0001>
module attributes {stable_mosaic.version = 11 : i64} {
  func.func @_fused_lightgcn_bpr_kernel(%arg0: i32, %arg1: memref<8x128xi32, #tpu.memory_space<vmem>>, %arg2: memref<8x40xf32, #tpu.memory_space<vmem>>, %arg3: memref<40x32xf32, #tpu.memory_space<vmem>>, %arg4: memref<1x128xf32, #tpu.memory_space<vmem>>, %arg5: memref<1x128xf32, #tpu.memory_space<vmem>>, %arg6: memref<40x32xf32, #tpu.memory_space<vmem>>) attributes {dimension_semantics = [#tpu.dimension_semantics<arbitrary>], iteration_bounds = array<i64: 5>, scalar_prefetch = 0 : i64, scratch_operands = 1 : i64, tpu.core_type = #tpu.core_type<tc>, window_params = [{pipeline_mode = #tpu.pipeline_mode<synchronous>, transform_indices = @transform_0, window_bounds = array<i64: 8, 128>}, {transform_indices = @transform_1, window_bounds = array<i64: 8, 40>}, {pipeline_mode = #tpu.pipeline_mode<synchronous>, transform_indices = @transform_2, window_bounds = array<i64: 40, 32>}, {pipeline_mode = #tpu.pipeline_mode<synchronous>, transform_indices = @transform_3, window_bounds = array<i64: 1, 128>}, {pipeline_mode = #tpu.pipeline_mode<synchronous>, transform_indices = @transform_4, window_bounds = array<i64: 1, 128>}]} {
    %c8_i32 = arith.constant 8 : i32
    %0 = arith.muli %arg0, %c8_i32 : i32
    %1 = tpu.assume_multiple %0, 8 : i32
    %c0 = arith.constant 0 : index
    %c0_0 = arith.constant 0 : index
    %2 = vector.load %arg2[%c0, %c0_0] : memref<8x40xf32, #tpu.memory_space<vmem>>, vector<8x40xf32>
    %c0_1 = arith.constant 0 : index
    %c0_2 = arith.constant 0 : index
    %3 = vector.load %arg3[%c0_1, %c0_2] : memref<40x32xf32, #tpu.memory_space<vmem>>, vector<40x32xf32>
    %cst = arith.constant dense<0.000000e+00> : vector<8x32xf32>
    %4 = tpu.matmul %2, %3, %cst {dimension_numbers = #tpu.dot_dimension_numbers<[1], [0], [0], [1], [0, 0, 1, 1], [], []>} : vector<8x40xf32>, vector<40x32xf32>, vector<8x32xf32> -> vector<8x32xf32>
    %5 = arith.index_cast %1 : i32 to index
    %c0_3 = arith.constant 0 : index
    %6 = vector.load %arg3[%5, %c0_3] : memref<40x32xf32, #tpu.memory_space<vmem>>, vector<8x32xf32>
    %7 = arith.addf %6, %4 : vector<8x32xf32>
    %cst_4 = arith.constant 5.000000e-01 : f32
    %8 = vector.broadcast %cst_4 : f32 to vector<8x32xf32>
    %9 = arith.mulf %8, %7 : vector<8x32xf32>
    %10 = arith.index_cast %1 : i32 to index
    %c0_5 = arith.constant 0 : index
    %11 = vector.load %arg6[%10, %c0_5] : memref<40x32xf32, #tpu.memory_space<vmem>>, vector<8x32xf32>
    tpu.vector_store %arg6[%10, %c0_5], %9 {strides = array<i32>} : memref<40x32xf32, #tpu.memory_space<vmem>>, vector<8x32xf32>,
    %c4_i32 = arith.constant 4 : i32
    %12 = arith.cmpi eq, %arg0, %c4_i32 : i32
    %13 = arith.extui %12 : i1 to i32
    %c0_i32 = arith.constant 0 : i32
    %14 = arith.cmpi ne, %13, %c0_i32 : i32
    scf.if %14 {
      %c0_6 = arith.constant 0 : index
      %c0_7 = arith.constant 0 : index
      %15 = vector.load %arg6[%c0_6, %c0_7] : memref<40x32xf32, #tpu.memory_space<vmem>>, vector<40x32xf32>
      %c0_8 = arith.constant 0 : index
      %c0_9 = arith.constant 0 : index
      %16 = vector.load %arg1[%c0_8, %c0_9] : memref<8x128xi32, #tpu.memory_space<vmem>>, vector<8x128xi32>
      %17 = tpu.iota {dimensions = array<i32: 0>} : vector<40x128xi32>
      %18 = vector.extract_strided_slice %16 {offsets = [0, 0], sizes = [1, 128], strides = [1, 1]} : vector<8x128xi32> to vector<1x128xi32>
      %19 = vector.broadcast %18 : vector<1x128xi32> to vector<40x128xi32>
      %20 = arith.cmpi eq, %17, %19 : vector<40x128xi32>
      %cst_10 = arith.constant 1.000000e+00 : f32
      %cst_11 = arith.constant 0.000000e+00 : f32
      %21 = vector.broadcast %cst_10 : f32 to vector<40x128xf32>
      %22 = vector.broadcast %cst_11 : f32 to vector<40x128xf32>
      %23 = arith.select %20, %21, %22 : vector<40x128xi1>, vector<40x128xf32>
      %24 = vector.extract_strided_slice %16 {offsets = [1, 0], sizes = [1, 128], strides = [1, 1]} : vector<8x128xi32> to vector<1x128xi32>
      %25 = vector.broadcast %24 : vector<1x128xi32> to vector<40x128xi32>
      %26 = arith.cmpi eq, %17, %25 : vector<40x128xi32>
      %cst_12 = arith.constant 1.000000e+00 : f32
      %cst_13 = arith.constant 0.000000e+00 : f32
      %27 = vector.broadcast %cst_12 : f32 to vector<40x128xf32>
      %28 = vector.broadcast %cst_13 : f32 to vector<40x128xf32>
      %29 = arith.select %26, %27, %28 : vector<40x128xi1>, vector<40x128xf32>
      %30 = vector.extract_strided_slice %16 {offsets = [2, 0], sizes = [1, 128], strides = [1, 1]} : vector<8x128xi32> to vector<1x128xi32>
      %31 = vector.broadcast %30 : vector<1x128xi32> to vector<40x128xi32>
      %32 = arith.cmpi eq, %17, %31 : vector<40x128xi32>
      %cst_14 = arith.constant 1.000000e+00 : f32
      %cst_15 = arith.constant 0.000000e+00 : f32
      %33 = vector.broadcast %cst_14 : f32 to vector<40x128xf32>
      %34 = vector.broadcast %cst_15 : f32 to vector<40x128xf32>
      %35 = arith.select %32, %33, %34 : vector<40x128xi1>, vector<40x128xf32>
      %cst_16 = arith.constant dense<0.000000e+00> : vector<32x128xf32>
      %36 = tpu.matmul %15, %23, %cst_16 {dimension_numbers = #tpu.dot_dimension_numbers<[0], [0], [1], [1], [0, 1, 1, 1], [], []>} : vector<40x32xf32>, vector<40x128xf32>, vector<32x128xf32> -> vector<32x128xf32>
      %cst_17 = arith.constant dense<0.000000e+00> : vector<32x128xf32>
      %37 = tpu.matmul %15, %29, %cst_17 {dimension_numbers = #tpu.dot_dimension_numbers<[0], [0], [1], [1], [0, 1, 1, 1], [], []>} : vector<40x32xf32>, vector<40x128xf32>, vector<32x128xf32> -> vector<32x128xf32>
      %cst_18 = arith.constant dense<0.000000e+00> : vector<32x128xf32>
      %38 = tpu.matmul %15, %35, %cst_18 {dimension_numbers = #tpu.dot_dimension_numbers<[0], [0], [1], [1], [0, 1, 1, 1], [], []>} : vector<40x32xf32>, vector<40x128xf32>, vector<32x128xf32> -> vector<32x128xf32>
      %39 = arith.mulf %36, %37 : vector<32x128xf32>
      %cst_19 = arith.constant dense<0.000000e+00> : vector<128xf32>
      %40 = vector.multi_reduction <add>, %39, %cst_19 [0] : vector<32x128xf32> to vector<128xf32>
      %41 = vector.shape_cast %40 : vector<128xf32> to vector<1x128xf32>
      %c0_20 = arith.constant 0 : index
      %c0_21 = arith.constant 0 : index
      %42 = vector.load %arg4[%c0_20, %c0_21] : memref<1x128xf32, #tpu.memory_space<vmem>>, vector<1x128xf32>
      tpu.vector_store %arg4[%c0_20, %c0_21], %41 {strides = array<i32>} : memref<1x128xf32, #tpu.memory_space<vmem>>, vector<1x128xf32>,
      %43 = arith.mulf %36, %38 : vector<32x128xf32>
      %cst_22 = arith.constant dense<0.000000e+00> : vector<128xf32>
      %44 = vector.multi_reduction <add>, %43, %cst_22 [0] : vector<32x128xf32> to vector<128xf32>
      %45 = vector.shape_cast %44 : vector<128xf32> to vector<1x128xf32>
      %c0_23 = arith.constant 0 : index
      %c0_24 = arith.constant 0 : index
      %46 = vector.load %arg5[%c0_23, %c0_24] : memref<1x128xf32, #tpu.memory_space<vmem>>, vector<1x128xf32>
      tpu.vector_store %arg5[%c0_23, %c0_24], %45 {strides = array<i32>} : memref<1x128xf32, #tpu.memory_space<vmem>>, vector<1x128xf32>,
    } else {
    }
    return
  }
  func.func @transform_0(%arg0: i32) -> (i32, i32) {
    %c0_i32 = arith.constant 0 : i32
    %c0_i32_0 = arith.constant 0 : i32
    %c0_i32_1 = arith.constant 0 : i32
    return %c0_i32, %c0_i32_0 : i32, i32
  }
  func.func @transform_1(%arg0: i32) -> (i32, i32) {
    %c0_i32 = arith.constant 0 : i32
    %c0_i32_0 = arith.constant 0 : i32
    return %arg0, %c0_i32 : i32, i32
  }
  func.func @transform_2(%arg0: i32) -> (i32, i32) {
    %c0_i32 = arith.constant 0 : i32
    %c0_i32_0 = arith.constant 0 : i32
    %c0_i32_1 = arith.constant 0 : i32
    return %c0_i32, %c0_i32_0 : i32, i32
  }
  func.func @transform_3(%arg0: i32) -> (i32, i32) {
    %c0_i32 = arith.constant 0 : i32
    %c0_i32_0 = arith.constant 0 : i32
    %c0_i32_1 = arith.constant 0 : i32
    return %c0_i32, %c0_i32_0 : i32, i32
  }
  func.func @transform_4(%arg0: i32) -> (i32, i32) {
    %c0_i32 = arith.constant 0 : i32
    %c0_i32_0 = arith.constant 0 : i32
    %c0_i32_1 = arith.constant 0 : i32
    return %c0_i32, %c0_i32_0 : i32, i32
  }
}

</mosaic_0001>

<llo_original>
// kernel: tpu_custom_call.1
$region0: #{tpu_custom_call.1}
  #allocation0 [shape = 'u32[]', space=smem, size = 0x4, offset = 0x4, fixed_abs, tag = 'smem constant byte address 0x4 - core index']
  #allocation1 [shape = 'u32[144,128]{1,0:T(1,128)}', space=vmem, size = 0x12000, scoped, tag = 'internal scratch']
  #allocation2 [shape = 'f32[40,32]{1,0:T(8,128)}', space=vmem, size = 0x5000, scoped, tag = 'scratch operand']
  %s0 = inlined_call_operand.vmem [shape: s32[8,128], index: 0, kind: input, shape index: {}]
  %s1 = inlined_call_operand.vmem [shape: f32[40,40], index: 1, kind: input, shape index: {}]
  %s2 = inlined_call_operand.vmem [shape: f32[40,32], index: 2, kind: input, shape index: {}]
  %s3 = inlined_call_operand.hbm [shape: f32[1,128], index: 3, kind: output, shape index: {0}]
  %s4 = inlined_call_operand.hbm [shape: f32[1,128], index: 4, kind: output, shape index: {1}]
  %5 = xla_tuple %s3, %s4
  %s6 = sld [smem:[#allocation0]]
  $region57: #{tpu_custom_call.1} parent=0
    _
  %s8 = ssub.s32 1, %s6
  %s9 = scalar_select 0, %s8, %s6
  $region1: #{tpu_custom_call.1} parent=0
    #allocation3 [shape = 'u8[512]{0}', space=vmem, size = 0x400, scoped, tag = 'output window, operand 0, single buffered']
    #allocation4 [shape = 's32[2]{0}', space=sflag, size = 0x8, scoped, tag = 'scoped memory for tpu_custom_call.1']
    #allocation5 [shape = 'u8[512]{0}', space=vmem, size = 0x400, scoped, tag = 'output window, operand 1, single buffered']
    #allocation6 [shape = 's32[1]{0}', space=sflag, size = 0x4, scoped, tag = 'scoped memory for tpu_custom_call.1']
    %10 = vsyncpa [#allocation4], 0
    %11 = vsyncpa [#allocation6], 0
    loop: start=0, step=1, limit=7
    $region2: #{tpu_custom_call.1} parent=1 // loop_pre_header
      _
    $region3: #{tpu_custom_call.1} parent=1 // loop_header
      %s13 = sphi 0, %s17
      %p14 = scmp.ge.s32.totalorder %s13, 7
      %s21 = sphi 0, %s21
      %s23 = sphi 0, %s21
      %s24 = sphi 0, %s23
      %s38 = sphi 0, %s24
      %s44 = sphi 0, %s46
      %s47 = sphi 0, %s44
      %s48 = sphi 0, %s47
      %s64 = sphi 0, %s48
      %s68 = sphi 0, %s68
      %s70 = sphi 0, %s68
      %s71 = sphi 0, %s70
      %s85 = sphi 0, %s71
      %s89 = sphi 0, %s89
      %s91 = sphi 0, %s89
      %s92 = sphi 0, %s91
      %s106 = sphi 0, %s92
      %s110 = sphi 0, %s110
      %s112 = sphi 0, %s110
      %s113 = sphi 0, %s112
      %s127 = sphi 0, %s113
    $region4: #{tpu_custom_call.1} parent=1 // loop_header_branch
      %16 = sbr.rel (%p14) target = $region8
    $region5: #{tpu_custom_call.1} parent=1 // loop_body
      %s18 = ssub.s32 %s13, 1
      %s19 = ssub.s32 %s13, 2
      %s20 = sadd.s32 %s13, 1
      %s22 = sadd.s32 %s21, 1
      %p25 = scmp.eq.s32.totalorder %s13, 4
      %p26 = scmp.ne.s32.totalorder %s21, %s23
      %p27 = scmp.eq.s32.totalorder %s13, 0
      %p28 = por %p26, %p27
      %p29 = scmp.ne.s32.totalorder %s21, %s23
      %p30 = scmp.eq.s32.totalorder %s18, 4
      %p31 = por %p29, %p30
      %p32 = scmp.ne.s32.totalorder %s23, %s24
      %p33 = scmp.eq.s32.totalorder %s18, 0
      %p34 = por %p32, %p33
      %p35 = scmp.ne.s32.totalorder %s23, %s24
      %p36 = scmp.eq.s32.totalorder %s19, 4
      %p37 = por %p35, %p36
      %p39 = scmp.ne.s32.totalorder %s24, %s38
      %p40 = scmp.eq.s32.totalorder %s19, 0
      %p41 = por %p39, %p40
      %s42 = ssub.s32 %s13, %s20
      %p43 = scmp.eq.s32.totalorder %s42, 0
      %s45 = sadd.s32 %s44, 1
      %s46 = scalar_select %p43, %s44, %s45
      %p49 = pneg %p43
      %p50 = scmp.eq.s32.totalorder %s13, 4
      %p51 = por %p49, %p50
      %p52 = scmp.ne.s32.totalorder %s44, %s47
      %p53 = scmp.eq.s32.totalorder %s13, 0
      %p54 = por %p52, %p53
      %p55 = scmp.ne.s32.totalorder %s44, %s47
      %p56 = scmp.eq.s32.totalorder %s18, 4
      %p57 = por %p55, %p56
      %p58 = scmp.ne.s32.totalorder %s47, %s48
      %p59 = scmp.eq.s32.totalorder %s18, 0
      %p60 = por %p58, %p59
      %p61 = scmp.ne.s32.totalorder %s47, %s48
      %p62 = scmp.eq.s32.totalorder %s19, 4
      %p63 = por %p61, %p62
      %p65 = scmp.ne.s32.totalorder %s48, %s64
      %p66 = scmp.eq.s32.totalorder %s19, 0
      %p67 = por %p65, %p66
      %s69 = sadd.s32 %s68, 1
      %p72 = scmp.eq.s32.totalorder %s13, 4
      %p73 = scmp.ne.s32.totalorder %s68, %s70
      %p74 = scmp.eq.s32.totalorder %s13, 0
      %p75 = por %p73, %p74
      %p76 = scmp.ne.s32.totalorder %s68, %s70
      %p77 = scmp.eq.s32.totalorder %s18, 4
      %p78 = por %p76, %p77
      %p79 = scmp.ne.s32.totalorder %s70, %s71
      %p80 = scmp.eq.s32.totalorder %s18, 0
      %p81 = por %p79, %p80
      %p82 = scmp.ne.s32.totalorder %s70, %s71
      %p83 = scmp.eq.s32.totalorder %s19, 4
      %p84 = por %p82, %p83
      %p86 = scmp.ne.s32.totalorder %s71, %s85
      %p87 = scmp.eq.s32.totalorder %s19, 0
      %p88 = por %p86, %p87
      %s90 = sadd.s32 %s89, 1
      %p93 = scmp.eq.s32.totalorder %s13, 4
      %p94 = scmp.ne.s32.totalorder %s89, %s91
      %p95 = scmp.eq.s32.totalorder %s13, 0
      %p96 = por %p94, %p95
      %p97 = scmp.ne.s32.totalorder %s89, %s91
      %p98 = scmp.eq.s32.totalorder %s18, 4
      %p99 = por %p97, %p98
      %p100 = scmp.ne.s32.totalorder %s91, %s92
      %p101 = scmp.eq.s32.totalorder %s18, 0
      %p102 = por %p100, %p101
      %p103 = scmp.ne.s32.totalorder %s91, %s92
      %p104 = scmp.eq.s32.totalorder %s19, 4
      %p105 = por %p103, %p104
      %p107 = scmp.ne.s32.totalorder %s92, %s106
      %p108 = scmp.eq.s32.totalorder %s19, 0
      %p109 = por %p107, %p108
      %s111 = sadd.s32 %s110, 1
      %p114 = scmp.eq.s32.totalorder %s13, 4
      %p115 = scmp.ne.s32.totalorder %s110, %s112
      %p116 = scmp.eq.s32.totalorder %s13, 0
      %p117 = por %p115, %p116
      %p118 = scmp.ne.s32.totalorder %s110, %s112
      %p119 = scmp.eq.s32.totalorder %s18, 4
      %p120 = por %p118, %p119
      %p121 = scmp.ne.s32.totalorder %s112, %s113
      %p122 = scmp.eq.s32.totalorder %s18, 0
      %p123 = por %p121, %p122
      %p124 = scmp.ne.s32.totalorder %s112, %s113
      %p125 = scmp.eq.s32.totalorder %s19, 4
      %p126 = por %p124, %p125
      %p128 = scmp.ne.s32.totalorder %s113, %s127
      %p129 = scmp.eq.s32.totalorder %s19, 0
      %p130 = por %p128, %p129
      %p131 = scmp.le.s32.totalorder 1, %s13
      %p132 = scmp.lt.s32.totalorder %s13, 6
      %p133 = pnand %p131, %p132
      %p134 = pneg %p133
      // Predicated region
      $region9: #{tpu_custom_call.1} parent=5 // pred_check
        _
      $region10: #{tpu_custom_call.1} parent=5 // pred_check_branch
        %136 = sbr.rel (%p133) target = $region12
      $region11: #{tpu_custom_call.1} parent=5 // pred_region
        %s137 = ssub.s32 %s13, 1
        // Predicated region
        $region13: #{tpu_custom_call.1} parent=11 // pred_check
          %p138 = pneg %p34
        $region14: #{tpu_custom_call.1} parent=11 // pred_check_branch
          %140 = sbr.rel (%p138) target = $region16
        $region15: #{tpu_custom_call.1} parent=11 // pred_region
          _
        $region16: #{tpu_custom_call.1} parent=11 // pred_fallthru
          _
        // Predicated region
        $region17: #{tpu_custom_call.1} parent=11 // pred_check
          %p141 = pneg %p81
        $region18: #{tpu_custom_call.1} parent=11 // pred_check_branch
          %143 = sbr.rel (%p141) target = $region20
        $region19: #{tpu_custom_call.1} parent=11 // pred_region
          _
        $region20: #{tpu_custom_call.1} parent=11 // pred_fallthru
          _
      $region12: #{tpu_custom_call.1} parent=5 // pred_fallthru
        _
      %p144 = scmp.lt.s32.totalorder %s13, 5
      // Predicated region
      $region21: #{tpu_custom_call.1} parent=5 // pred_check
        %p145 = pneg %p144
      $region22: #{tpu_custom_call.1} parent=5 // pred_check_branch
        %147 = sbr.rel (%p145) target = $region24
      $region23: #{tpu_custom_call.1} parent=5 // pred_region
        // Predicated region
        $region25: #{tpu_custom_call.1} parent=23 // pred_check
          %p148 = pneg %p54
        $region26: #{tpu_custom_call.1} parent=23 // pred_check_branch
          %150 = sbr.rel (%p148) target = $region28
        $region27: #{tpu_custom_call.1} parent=23 // pred_region
          %p151 = scmp.lt.s32.totalorder %s13, 4
          %s152 = scalar_select %p151, %s13, 4
          %s153 = smul.addr %s152, 8
          %s154 = scalar_lea.vmem %s1, %s153
        $region28: #{tpu_custom_call.1} parent=23 // pred_fallthru
          _
      $region24: #{tpu_custom_call.1} parent=5 // pred_fallthru
        _
      %p155 = scmp.le.s32.totalorder 1, %s13
      %p156 = scmp.lt.s32.totalorder %s13, 6
      %p157 = pnand %p155, %p156
      %p158 = pneg %p157
      // Predicated region
      $region29: #{tpu_custom_call.1} parent=5 // pred_check
        _
      $region30: #{tpu_custom_call.1} parent=5 // pred_check_branch
        %160 = sbr.rel (%p157) target = $region32
      $region31: #{tpu_custom_call.1} parent=5 // pred_region
        %s161 = ssub.s32 %s13, 1
        %p162 = pneg %p34
        %p163 = pneg %p31
        %p164 = scmp.lt.s32.totalorder %s18, 4
        %s165 = scalar_select %p164, %s18, 4
        %s166 = smul.addr %s165, 8
        %s167 = scalar_lea.vmem %s1, %s166
        %p168 = pneg %p60
        %p169 = pneg %p57
        %p170 = pneg %p81
        %p171 = pneg %p78
        %p172 = pneg %p102
        %p173 = pneg %p99
        %p174 = pneg %p123
        %p175 = pneg %p120
        %p176 = scmp.lt.s32.totalorder %s18, 4
        %s177 = scalar_select %p176, %s18, 4
        %s178 = smul.addr %s177, 8
        %s179 = scalar_lea.vmem %s1, %s178
        %s180 = smul.u32 %s18, 8
        %v181 = vld [vmem:[%s179] sm:$0xff]
        %v182 = vld [vmem:[%s2] sm:$0xff]
        %v183 = vld [vmem:[%s2 + $0x8] sm:$0xff]
        %v184 = vld [vmem:[%s2 + $0x10] sm:$0xff]
        %v185 = vld [vmem:[%s2 + $0x18] sm:$0xff]
        %v186 = vld [vmem:[%s2 + $0x20] sm:$0xff]
        %vm187 = vcmask 326656
        %v189 = vsel %vm187, %v181, 0
        %191 = vmatprep.subr.mxu0 0.0
        %192 = vmatpush1.msra.mxu0 %v182
        %193 = vmatprep.subr.mxu0 0.0
        %194 = vmatpush1.msra.mxu0 %v183
        %195 = vmatprep.subr.mxu0 0.0
        %196 = vmatpush1.msra.mxu0 %v184
        %197 = vmatprep.subr.mxu0 0.0
        %198 = vmatpush1.msra.mxu0 %v185
        %199 = vmatprep.subr.mxu0 0.0
        %200 = vmatpush1.msra.mxu0 %v186
        %201 = vmatprep.subr.mxu0 0.0
        %202 = vmatpush1.msra.mxu0 0.0
        %203 = vmatprep.subr.mxu0 0.0
        %204 = vmatpush1.msra.mxu0 0.0
        %205 = vmatprep.subr.mxu0 0.0
        %206 = vmatpush1.msra.mxu0 0.0
        %207 = vmatprep.subr.mxu0 0.0
        %208 = vmatpush1.msra.mxu0 0.0
        %209 = vmatprep.subr.mxu0 0.0
        %210 = vmatpush1.msra.mxu0 0.0
        %211 = vmatprep.subr.mxu0 0.0
        %212 = vmatpush1.msra.mxu0 0.0
        %213 = vmatprep.subr.mxu0 0.0
        %214 = vmatpush1.msra.mxu0 0.0
        %215 = vmatprep.subr.mxu0 0.0
        %216 = vmatpush1.msra.mxu0 0.0
        %217 = vmatprep.subr.mxu0 0.0
        %218 = vmatpush1.msra.mxu0 0.0
        %219 = vmatprep.subr.mxu0 0.0
        %220 = vmatpush1.msra.mxu0 0.0
        %221 = vmatprep.subr.mxu0 0.0
        %222 = vmatpush1.msra.mxu0 0.0
        %223 = vmatprep.subr.mxu0 0.0
        %224 = vmatpush1.msra.mxu0 0.0
        %225 = vmatprep.subr.mxu0 0.0
        %226 = vmatpush1.msra.mxu0 0.0
        %227 = vmatprep.subr.mxu0 0.0
        %228 = vmatpush1.msra.mxu0 0.0
        %229 = vmatprep.subr.mxu0 0.0
        %230 = vmatpush1.msra.mxu0 0.0
        %231 = vmatprep.subr.mxu0 0.0
        %232 = vmatpush1.msra.mxu0 0.0
        %233 = vmatprep.subr.mxu0 0.0
        %234 = vmatpush1.msra.mxu0 0.0
        %235 = vmatprep.subr.mxu0 0.0
        %236 = vmatpush1.msra.mxu0 0.0
        %237 = vmatprep.subr.mxu0 0.0
        %238 = vmatpush1.msra.mxu0 0.0
        %239 = vmatprep.subr.mxu0 0.0
        %240 = vmatpush1.msra.mxu0 0.0
        %241 = vmatprep.subr.mxu0 0.0
        %242 = vmatpush1.msra.mxu0 0.0
        %243 = vmatprep.subr.mxu0 0.0
        %244 = vmatpush1.msra.mxu0 0.0
        %245 = vmatprep.subr.mxu0 0.0
        %246 = vmatpush1.msra.mxu0 0.0
        %247 = vmatprep.subr.mxu0 0.0
        %248 = vmatpush1.msra.mxu0 0.0
        %249 = vmatprep.subr.mxu0 0.0
        %250 = vmatpush1.msra.mxu0 0.0
        %251 = vmatprep.subr.mxu0 0.0
        %252 = vmatpush1.msra.mxu0 0.0
        %253 = vmatprep.subr.mxu0 0.0
        %254 = vmatpush1.msra.mxu0 0.0
        %255 = vmatprep.mubr.f32.mxu0 0.0
        %256 = vmatmul.mubr.f32.gmra.mrb[0].mxu0 %v189
        %v257 = vpop.f32.mrb[0].mxu0
        %v258 = vadd.f32 0.0, %v257
        %v259 = vpop.f32.mrb[0].mxu0
        %260 = vdwg.mxu0
        %s261 = scalar_lea.vmem %s2, %s180
        %v262 = vld [vmem:[%s261] sm:$0xff]
        %v263 = vadd.f32 %v262, %v258
        %v264 = vmul.f32 %v263, 0.5
        %s265 = scalar_lea.vmem [#allocation2], %s180
        %vm266 = vcmask 261120
        %267 = vst.msk [vmem:[%s265] sm:$0xff] %vm266, %v264
        %p268 = scmp.eq.s32.totalorder %s18, 4
        // Predicated region
        $region33: #{tpu_custom_call.1} parent=31 // pred_check
          %p269 = pneg %p268
        $region34: #{tpu_custom_call.1} parent=31 // pred_check_branch
          %271 = sbr.rel (%p269) target = $region36
        $region35: #{tpu_custom_call.1} parent=31 // pred_region
          %v272 = vld [vmem:[#allocation2] sm:$0xff]
          %v273 = vld [vmem:[#allocation2 + $0x8] sm:$0xff]
          %v274 = vld [vmem:[#allocation2 + $0x10] sm:$0xff]
          %v275 = vld [vmem:[#allocation2 + $0x18] sm:$0xff]
          %v276 = vld [vmem:[#allocation2 + $0x20] sm:$0xff]
          %v277 = vld [vmem:[%s0] sm:$0xff]
          %v278 = vlaneseq
          %v279 = vshrl.u32 %v278, 7
          %v280 = vadd.s32 %v279, 8
          %v281 = vadd.s32 %v279, 16
          %v282 = vadd.s32 %v279, 24
          %v283 = vadd.s32 %v279, 32
          %v284 = vlaneseq
          %v285 = vshrl.u32 %v284, 7
          %v286 = vsub.s32 0, %v285
          %v287 = vrot.slane %v277, %v286
          %vm288 = vcmp.eq.s32.totalorder %v279, %v287
          %vm289 = vcmp.eq.s32.totalorder %v280, %v287
          %vm290 = vcmp.eq.s32.totalorder %v281, %v287
          %vm291 = vcmp.eq.s32.totalorder %v282, %v287
          %vm292 = vcmp.eq.s32.totalorder %v283, %v287
          %v293 = vsel %vm288, 1.0, 0.0
          %v294 = vsel %vm289, 1.0, 0.0
          %v295 = vsel %vm290, 1.0, 0.0
          %v296 = vsel %vm291, 1.0, 0.0
          %v297 = vsel %vm292, 1.0, 0.0
          %v298 = vlaneseq
          %v299 = vshrl.u32 %v298, 7
          %v300 = vsub.s32 1, %v299
          %v301 = vrot.slane %v277, %v300
          %vm302 = vcmp.eq.s32.totalorder %v279, %v301
          %vm303 = vcmp.eq.s32.totalorder %v280, %v301
          %vm304 = vcmp.eq.s32.totalorder %v281, %v301
          %vm305 = vcmp.eq.s32.totalorder %v282, %v301
          %vm306 = vcmp.eq.s32.totalorder %v283, %v301
          %v307 = vsel %vm302, 1.0, 0.0
          %v308 = vsel %vm303, 1.0, 0.0
          %v309 = vsel %vm304, 1.0, 0.0
          %v310 = vsel %vm305, 1.0, 0.0
          %v311 = vsel %vm306, 1.0, 0.0
          %v312 = vlaneseq
          %v313 = vshrl.u32 %v312, 7
          %v314 = vsub.s32 2, %v313
          %v315 = vrot.slane %v277, %v314
          %vm316 = vcmp.eq.s32.totalorder %v279, %v315
          %vm317 = vcmp.eq.s32.totalorder %v280, %v315
          %vm318 = vcmp.eq.s32.totalorder %v281, %v315
          %vm319 = vcmp.eq.s32.totalorder %v282, %v315
          %vm320 = vcmp.eq.s32.totalorder %v283, %v315
          %v321 = vsel %vm316, 1.0, 0.0
          %v322 = vsel %vm317, 1.0, 0.0
          %v323 = vsel %vm318, 1.0, 0.0
          %v324 = vsel %vm319, 1.0, 0.0
          %v325 = vsel %vm320, 1.0, 0.0
          %326 = vxpose.xlu0.b32.start [1/16] %v272, 128
          %327 = vxpose.xlu0.b32.cont [2/16] %v273, 128
          %328 = vxpose.xlu0.b32.cont [3/16] %v274, 128
          %329 = vxpose.xlu0.b32.cont [4/16] %v275, 128
          %330 = vxpose.xlu0.b32.cont [5/16] %v276, 128
          %331 = vxpose.xlu0.b32.cont [6/16] 0.0, 128
          %332 = vxpose.xlu0.b32.cont [7/16] 0.0, 128
          %333 = vxpose.xlu0.b32.cont [8/16] 0.0, 128
          %334 = vxpose.xlu0.b32.cont [9/16] 0.0, 128
          %335 = vxpose.xlu0.b32.cont [10/16] 0.0, 128
          %336 = vxpose.xlu0.b32.cont [11/16] 0.0, 128
          %337 = vxpose.xlu0.b32.cont [12/16] 0.0, 128
          %338 = vxpose.xlu0.b32.cont [13/16] 0.0, 128
          %339 = vxpose.xlu0.b32.cont [14/16] 0.0, 128
          %340 = vxpose.xlu0.b32.cont [15/16] 0.0, 128
          %341 = vxpose.xlu0.b32.end [16/16] 0.0, 128
          %v342 = vpop.trf.xlu0
          %v343 = vpop.trf.xlu0
          %v344 = vpop.trf.xlu0
          %v345 = vpop.trf.xlu0
          %v346 = vpop.trf.xlu0
          %v347 = vpop.trf.xlu0
          %v348 = vpop.trf.xlu0
          %v349 = vpop.trf.xlu0
          %v350 = vpop.trf.xlu0
          %v351 = vpop.trf.xlu0
          %v352 = vpop.trf.xlu0
          %v353 = vpop.trf.xlu0
          %v354 = vpop.trf.xlu0
          %v355 = vpop.trf.xlu0
          %v356 = vpop.trf.xlu0
          %v357 = vpop.trf.xlu0
          %v359 = vsel %vm187, %v342, 0
          %v362 = vsel %vm187, %v343, 0
          %v365 = vsel %vm187, %v344, 0
          %v368 = vsel %vm187, %v345, 0
          %370 = vmatprep.subr.mxu0 0.0
          %371 = vmatpush1.msra.mxu0 %v293
          %372 = vmatprep.subr.mxu0 0.0
          %373 = vmatpush1.msra.mxu0 %v294
          %374 = vmatprep.subr.mxu0 0.0
          %375 = vmatpush1.msra.mxu0 %v295
          %376 = vmatprep.subr.mxu0 0.0
          %377 = vmatpush1.msra.mxu0 %v296
          %378 = vmatprep.subr.mxu0 0.0
          %379 = vmatpush1.msra.mxu0 %v297
          %380 = vmatprep.subr.mxu0 0.0
          %381 = vmatpush1.msra.mxu0 0.0
          %382 = vmatprep.subr.mxu0 0.0
          %383 = vmatpush1.msra.mxu0 0.0
          %384 = vmatprep.subr.mxu0 0.0
          %385 = vmatpush1.msra.mxu0 0.0
          %386 = vmatprep.subr.mxu0 0.0
          %387 = vmatpush1.msra.mxu0 0.0
          %388 = vmatprep.subr.mxu0 0.0
          %389 = vmatpush1.msra.mxu0 0.0
          %390 = vmatprep.subr.mxu0 0.0
          %391 = vmatpush1.msra.mxu0 0.0
          %392 = vmatprep.subr.mxu0 0.0
          %393 = vmatpush1.msra.mxu0 0.0
          %394 = vmatprep.subr.mxu0 0.0
          %395 = vmatpush1.msra.mxu0 0.0
          %396 = vmatprep.subr.mxu0 0.0
          %397 = vmatpush1.msra.mxu0 0.0
          %398 = vmatprep.subr.mxu0 0.0
          %399 = vmatpush1.msra.mxu0 0.0
          %400 = vmatprep.subr.mxu0 0.0
          %401 = vmatpush1.msra.mxu0 0.0
          %402 = vmatprep.subr.mxu0 0.0
          %403 = vmatpush1.msra.mxu0 0.0
          %404 = vmatprep.subr.mxu0 0.0
          %405 = vmatpush1.msra.mxu0 0.0
          %406 = vmatprep.subr.mxu0 0.0
          %407 = vmatpush1.msra.mxu0 0.0
          %408 = vmatprep.subr.mxu0 0.0
          %409 = vmatpush1.msra.mxu0 0.0
          %410 = vmatprep.subr.mxu0 0.0
          %411 = vmatpush1.msra.mxu0 0.0
          %412 = vmatprep.subr.mxu0 0.0
          %413 = vmatpush1.msra.mxu0 0.0
          %414 = vmatprep.subr.mxu0 0.0
          %415 = vmatpush1.msra.mxu0 0.0
          %416 = vmatprep.subr.mxu0 0.0
          %417 = vmatpush1.msra.mxu0 0.0
          %418 = vmatprep.subr.mxu0 0.0
          %419 = vmatpush1.msra.mxu0 0.0
          %420 = vmatprep.subr.mxu0 0.0
          %421 = vmatpush1.msra.mxu0 0.0
          %422 = vmatprep.subr.mxu0 0.0
          %423 = vmatpush1.msra.mxu0 0.0
          %424 = vmatprep.subr.mxu0 0.0
          %425 = vmatpush1.msra.mxu0 0.0
          %426 = vmatprep.subr.mxu0 0.0
          %427 = vmatpush1.msra.mxu0 0.0
          %428 = vmatprep.subr.mxu0 0.0
          %429 = vmatpush1.msra.mxu0 0.0
          %430 = vmatprep.subr.mxu0 0.0
          %431 = vmatpush1.msra.mxu0 0.0
          %432 = vmatprep.subr.mxu0 0.0
          %433 = vmatpush1.msra.mxu0 0.0
          %434 = vmatprep.mubr.f32.mxu0 0.0
          %435 = vmatmul.mubr.f32.gmra.mrb[0].mxu0 %v359
          %v436 = vpop.f32.mrb[0].mxu0
          %v437 = vadd.f32 0.0, %v436
          %v438 = vpop.f32.mrb[0].mxu0
          %439 = vmatprep.mubr.f32.mxu0 0.0
          %440 = vmatmul.mubr.f32.gmra.mrb[0].mxu0 %v362
          %v441 = vpop.f32.mrb[0].mxu0
          %v442 = vadd.f32 0.0, %v441
          %v443 = vpop.f32.mrb[0].mxu0
          %444 = vmatprep.mubr.f32.mxu0 0.0
          %445 = vmatmul.mubr.f32.gmra.mrb[0].mxu0 %v365
          %v446 = vpop.f32.mrb[0].mxu0
          %v447 = vadd.f32 0.0, %v446
          %v448 = vpop.f32.mrb[0].mxu0
          %449 = vmatprep.mubr.f32.mxu0 0.0
          %450 = vmatmul.mubr.f32.gmra.mrb[0].mxu0 %v368
          %v451 = vpop.f32.mrb[0].mxu0
          %v452 = vadd.f32 0.0, %v451
          %v453 = vpop.f32.mrb[0].mxu0
          %454 = vdwg.mxu0
          %455 = vmatprep.subr.mxu0 0.0
          %456 = vmatpush1.msra.mxu0 %v307
          %457 = vmatprep.subr.mxu0 0.0
          %458 = vmatpush1.msra.mxu0 %v308
          %459 = vmatprep.subr.mxu0 0.0
          %460 = vmatpush1.msra.mxu0 %v309
          %461 = vmatprep.subr.mxu0 0.0
          %462 = vmatpush1.msra.mxu0 %v310
          %463 = vmatprep.subr.mxu0 0.0
          %464 = vmatpush1.msra.mxu0 %v311
          %465 = vmatprep.subr.mxu0 0.0
          %466 = vmatpush1.msra.mxu0 0.0
          %467 = vmatprep.subr.mxu0 0.0
          %468 = vmatpush1.msra.mxu0 0.0
          %469 = vmatprep.subr.mxu0 0.0
          %470 = vmatpush1.msra.mxu0 0.0
          %471 = vmatprep.subr.mxu0 0.0
          %472 = vmatpush1.msra.mxu0 0.0
          %473 = vmatprep.subr.mxu0 0.0
          %474 = vmatpush1.msra.mxu0 0.0
          %475 = vmatprep.subr.mxu0 0.0
          %476 = vmatpush1.msra.mxu0 0.0
          %477 = vmatprep.subr.mxu0 0.0
          %478 = vmatpush1.msra.mxu0 0.0
          %479 = vmatprep.subr.mxu0 0.0
          %480 = vmatpush1.msra.mxu0 0.0
          %481 = vmatprep.subr.mxu0 0.0
          %482 = vmatpush1.msra.mxu0 0.0
          %483 = vmatprep.subr.mxu0 0.0
          %484 = vmatpush1.msra.mxu0 0.0
          %485 = vmatprep.subr.mxu0 0.0
          %486 = vmatpush1.msra.mxu0 0.0
          %487 = vmatprep.subr.mxu0 0.0
          %488 = vmatpush1.msra.mxu0 0.0
          %489 = vmatprep.subr.mxu0 0.0
          %490 = vmatpush1.msra.mxu0 0.0
          %491 = vmatprep.subr.mxu0 0.0
          %492 = vmatpush1.msra.mxu0 0.0
          %493 = vmatprep.subr.mxu0 0.0
          %494 = vmatpush1.msra.mxu0 0.0
          %495 = vmatprep.subr.mxu0 0.0
          %496 = vmatpush1.msra.mxu0 0.0
          %497 = vmatprep.subr.mxu0 0.0
          %498 = vmatpush1.msra.mxu0 0.0
          %499 = vmatprep.subr.mxu0 0.0
          %500 = vmatpush1.msra.mxu0 0.0
          %501 = vmatprep.subr.mxu0 0.0
          %502 = vmatpush1.msra.mxu0 0.0
          %503 = vmatprep.subr.mxu0 0.0
          %504 = vmatpush1.msra.mxu0 0.0
          %505 = vmatprep.subr.mxu0 0.0
          %506 = vmatpush1.msra.mxu0 0.0
          %507 = vmatprep.subr.mxu0 0.0
          %508 = vmatpush1.msra.mxu0 0.0
          %509 = vmatprep.subr.mxu0 0.0
          %510 = vmatpush1.msra.mxu0 0.0
          %511 = vmatprep.subr.mxu0 0.0
          %512 = vmatpush1.msra.mxu0 0.0
          %513 = vmatprep.subr.mxu0 0.0
          %514 = vmatpush1.msra.mxu0 0.0
          %515 = vmatprep.subr.mxu0 0.0
          %516 = vmatpush1.msra.mxu0 0.0
          %517 = vmatprep.subr.mxu0 0.0
          %518 = vmatpush1.msra.mxu0 0.0
          %519 = vmatprep.mubr.f32.mxu0 0.0
          %520 = vmatmul.mubr.f32.gmra.mrb[0].mxu0 %v359
          %v521 = vpop.f32.mrb[0].mxu0
          %v522 = vadd.f32 0.0, %v521
          %v523 = vpop.f32.mrb[0].mxu0
          %524 = vmatprep.mubr.f32.mxu0 0.0
          %525 = vmatmul.mubr.f32.gmra.mrb[0].mxu0 %v362
          %v526 = vpop.f32.mrb[0].mxu0
          %v527 = vadd.f32 0.0, %v526
          %v528 = vpop.f32.mrb[0].mxu0
          %529 = vmatprep.mubr.f32.mxu0 0.0
          %530 = vmatmul.mubr.f32.gmra.mrb[0].mxu0 %v365
          %v531 = vpop.f32.mrb[0].mxu0
          %v532 = vadd.f32 0.0, %v531
          %v533 = vpop.f32.mrb[0].mxu0
          %534 = vmatprep.mubr.f32.mxu0 0.0
          %535 = vmatmul.mubr.f32.gmra.mrb[0].mxu0 %v368
          %v536 = vpop.f32.mrb[0].mxu0
          %v537 = vadd.f32 0.0, %v536
          %v538 = vpop.f32.mrb[0].mxu0
          %539 = vdwg.mxu0
          %540 = vmatprep.subr.mxu0 0.0
          %541 = vmatpush1.msra.mxu0 %v321
          %542 = vmatprep.subr.mxu0 0.0
          %543 = vmatpush1.msra.mxu0 %v322
          %544 = vmatprep.subr.mxu0 0.0
          %545 = vmatpush1.msra.mxu0 %v323
          %546 = vmatprep.subr.mxu0 0.0
          %547 = vmatpush1.msra.mxu0 %v324
          %548 = vmatprep.subr.mxu0 0.0
          %549 = vmatpush1.msra.mxu0 %v325
          %550 = vmatprep.subr.mxu0 0.0
          %551 = vmatpush1.msra.mxu0 0.0
          %552 = vmatprep.subr.mxu0 0.0
          %553 = vmatpush1.msra.mxu0 0.0
          %554 = vmatprep.subr.mxu0 0.0
          %555 = vmatpush1.msra.mxu0 0.0
          %556 = vmatprep.subr.mxu0 0.0
          %557 = vmatpush1.msra.mxu0 0.0
          %558 = vmatprep.subr.mxu0 0.0
          %559 = vmatpush1.msra.mxu0 0.0
          %560 = vmatprep.subr.mxu0 0.0
          %561 = vmatpush1.msra.mxu0 0.0
          %562 = vmatprep.subr.mxu0 0.0
          %563 = vmatpush1.msra.mxu0 0.0
          %564 = vmatprep.subr.mxu0 0.0
          %565 = vmatpush1.msra.mxu0 0.0
          %566 = vmatprep.subr.mxu0 0.0
          %567 = vmatpush1.msra.mxu0 0.0
          %568 = vmatprep.subr.mxu0 0.0
          %569 = vmatpush1.msra.mxu0 0.0
          %570 = vmatprep.subr.mxu0 0.0
          %571 = vmatpush1.msra.mxu0 0.0
          %572 = vmatprep.subr.mxu0 0.0
          %573 = vmatpush1.msra.mxu0 0.0
          %574 = vmatprep.subr.mxu0 0.0
          %575 = vmatpush1.msra.mxu0 0.0
          %576 = vmatprep.subr.mxu0 0.0
          %577 = vmatpush1.msra.mxu0 0.0
          %578 = vmatprep.subr.mxu0 0.0
          %579 = vmatpush1.msra.mxu0 0.0
          %580 = vmatprep.subr.mxu0 0.0
          %581 = vmatpush1.msra.mxu0 0.0
          %582 = vmatprep.subr.mxu0 0.0
          %583 = vmatpush1.msra.mxu0 0.0
          %584 = vmatprep.subr.mxu0 0.0
          %585 = vmatpush1.msra.mxu0 0.0
          %586 = vmatprep.subr.mxu0 0.0
          %587 = vmatpush1.msra.mxu0 0.0
          %588 = vmatprep.subr.mxu0 0.0
          %589 = vmatpush1.msra.mxu0 0.0
          %590 = vmatprep.subr.mxu0 0.0
          %591 = vmatpush1.msra.mxu0 0.0
          %592 = vmatprep.subr.mxu0 0.0
          %593 = vmatpush1.msra.mxu0 0.0
          %594 = vmatprep.subr.mxu0 0.0
          %595 = vmatpush1.msra.mxu0 0.0
          %596 = vmatprep.subr.mxu0 0.0
          %597 = vmatpush1.msra.mxu0 0.0
          %598 = vmatprep.subr.mxu0 0.0
          %599 = vmatpush1.msra.mxu0 0.0
          %600 = vmatprep.subr.mxu0 0.0
          %601 = vmatpush1.msra.mxu0 0.0
          %602 = vmatprep.subr.mxu0 0.0
          %603 = vmatpush1.msra.mxu0 0.0
          %604 = vmatprep.mubr.f32.mxu0 0.0
          %605 = vmatmul.mubr.f32.gmra.mrb[0].mxu0 %v359
          %v606 = vpop.f32.mrb[0].mxu0
          %v607 = vadd.f32 0.0, %v606
          %v608 = vpop.f32.mrb[0].mxu0
          %609 = vmatprep.mubr.f32.mxu0 0.0
          %610 = vmatmul.mubr.f32.gmra.mrb[0].mxu0 %v362
          %v611 = vpop.f32.mrb[0].mxu0
          %v612 = vadd.f32 0.0, %v611
          %v613 = vpop.f32.mrb[0].mxu0
          %614 = vmatprep.mubr.f32.mxu0 0.0
          %615 = vmatmul.mubr.f32.gmra.mrb[0].mxu0 %v365
          %v616 = vpop.f32.mrb[0].mxu0
          %v617 = vadd.f32 0.0, %v616
          %v618 = vpop.f32.mrb[0].mxu0
          %619 = vmatprep.mubr.f32.mxu0 0.0
          %620 = vmatmul.mubr.f32.gmra.mrb[0].mxu0 %v368
          %v621 = vpop.f32.mrb[0].mxu0
          %v622 = vadd.f32 0.0, %v621
          %v623 = vpop.f32.mrb[0].mxu0
          %624 = vdwg.mxu0
          %v625 = vmul.f32 %v437, %v522
          %v626 = vmul.f32 %v442, %v527
          %v627 = vmul.f32 %v447, %v532
          %v628 = vmul.f32 %v452, %v537
          %v629 = vadd.f32 %v625, %v626
          %v630 = vadd.f32 %v629, %v627
          %v631 = vadd.f32 %v630, %v628
          %v632 = vrot.slane %v631, 4
          %v633 = vadd.f32 %v631, %v632
          %v634 = vrot.slane %v633, 2
          %v635 = vadd.f32 %v633, %v634
          %v636 = vrot.slane %v635, 1
          %v637 = vadd.f32 %v635, %v636
          %638 = vst [vmem:[#allocation3] sm:$0x1] %v637
          %v639 = vmul.f32 %v437, %v607
          %v640 = vmul.f32 %v442, %v612
          %v641 = vmul.f32 %v447, %v617
          %v642 = vmul.f32 %v452, %v622
          %v643 = vadd.f32 %v639, %v640
          %v644 = vadd.f32 %v643, %v641
          %v645 = vadd.f32 %v644, %v642
          %v646 = vrot.slane %v645, 4
          %v647 = vadd.f32 %v645, %v646
          %v648 = vrot.slane %v647, 2
          %v649 = vadd.f32 %v647, %v648
          %v650 = vrot.slane %v649, 1
          %v651 = vadd.f32 %v649, %v650
          %652 = vst [vmem:[#allocation5] sm:$0x1] %v651
        $region36: #{tpu_custom_call.1} parent=31 // pred_fallthru
          _
        // Predicated region
        $region37: #{tpu_custom_call.1} parent=31 // pred_check
          %p653 = pneg %p99
        $region38: #{tpu_custom_call.1} parent=31 // pred_check_branch
          %655 = sbr.rel (%p653) target = $region40
        $region39: #{tpu_custom_call.1} parent=31 // pred_region
          %s657 = ssub.s32 16, 16
          %658 = vsyncadd [#allocation4], %s657
          %s660 = sshll.u32 [#allocation3], 4
          %s661 = int_to_ptr.vmem [resolvable:$true] %s660
          %663 = dma.vmem_to_hbm [thread:$0]  %s661, 16, %s3, [#allocation4]
        $region40: #{tpu_custom_call.1} parent=31 // pred_fallthru
          _
        // Predicated region
        $region41: #{tpu_custom_call.1} parent=31 // pred_check
          %p664 = pneg %p120
        $region42: #{tpu_custom_call.1} parent=31 // pred_check_branch
          %666 = sbr.rel (%p664) target = $region44
        $region43: #{tpu_custom_call.1} parent=31 // pred_region
          %s668 = ssub.s32 16, 16
          %669 = vsyncadd [#allocation6], %s668
          %s671 = sshll.u32 [#allocation5], 4
          %s672 = int_to_ptr.vmem [resolvable:$true] %s671
          %674 = dma.vmem_to_hbm [thread:$0]  %s672, 16, %s4, [#allocation6]
        $region44: #{tpu_custom_call.1} parent=31 // pred_fallthru
          _
        // Predicated region
        $region45: #{tpu_custom_call.1} parent=31 // pred_check
          %p675 = pneg %p99
        $region46: #{tpu_custom_call.1} parent=31 // pred_check_branch
          %677 = sbr.rel (%p675) target = $region48
        $region47: #{tpu_custom_call.1} parent=31 // pred_region
          %678 = dma.done [#allocation4], 16
        $region48: #{tpu_custom_call.1} parent=31 // pred_fallthru
          _
        // Predicated region
        $region49: #{tpu_custom_call.1} parent=31 // pred_check
          %p679 = pneg %p120
        $region50: #{tpu_custom_call.1} parent=31 // pred_check_branch
          %681 = sbr.rel (%p679) target = $region52
        $region51: #{tpu_custom_call.1} parent=31 // pred_region
          %682 = dma.done [#allocation6], 16
        $region52: #{tpu_custom_call.1} parent=31 // pred_fallthru
          _
      $region32: #{tpu_custom_call.1} parent=5 // pred_fallthru
        _
      %p683 = scmp.le.s32.totalorder 2, %s13
      // Predicated region
      $region53: #{tpu_custom_call.1} parent=5 // pred_check
        %p684 = pneg %p683
      $region54: #{tpu_custom_call.1} parent=5 // pred_check_branch
        %686 = sbr.rel (%p684) target = $region56
      $region55: #{tpu_custom_call.1} parent=5 // pred_region
        %s687 = ssub.s32 %s13, 2
      $region56: #{tpu_custom_call.1} parent=5 // pred_fallthru
        _
    $region6: #{tpu_custom_call.1} parent=1 // loop_footer
      %s17 = sadd.s32 1, %s13
    $region7: #{tpu_custom_call.1} parent=1 // loop_footer_branch
      %12 = sbr.rel target = $region3
    $region8: #{tpu_custom_call.1} parent=1 // loop_exit
      _
    %688 = vsyncpa [#allocation4], 1
    %s689 = scalar_lea.sflag [#allocation4], 1
    %690 = vsyncpa %s689, 1
    %691 = vsyncpa [#allocation6], 1

</llo_original>
